<compile_context>
chip_gen: v6e
topology: v6e:2x2x1
jax: 0.10.0
libtpu: 0.0.40
codegen_flags: <defaults>
</compile_context>

<pallas_src>
import jax
import jax.numpy as jnp
from jax import lax
from jax.experimental import pallas as pl
from jax.experimental.pallas import tpu as pltpu

_CLASS_FILL = -(2 ** 31)       # fill_value for jnp.unique padding (never a real pad label)
_LABEL_PAD = -(2 ** 31) + 1    # padding for the tiled-path label buffer (never matches a class)

_LANE = 128
_SMALL_N_LIMIT = 32 * 1024     # up to this many labels: single full-array block, no pad/slice
_MAX_ROWS_PER_BLOCK = 2048     # (2048, 128) int32 = 1 MiB per block on the tiled path
_UNROLL_CLASS_LIMIT = 16       # fully unroll the class scan up to this many classes


def _remap_kernel(classes_ref, labels_ref, out_ref):
    """out[e] = index of labels[e] in `classes`, or -1 if not present.

    classes_ref : SMEM int32[num_classes]   (episode class table)
    labels_ref  : VMEM int32[..., lanes]    (global labels tile)
    out_ref     : VMEM int32[..., lanes]    (episode-local labels tile)
    """
    labels = labels_ref[...]
    num_classes = classes_ref.shape[0]

    # cmp + select per class; classes are unique so at most one match per
    # element -> last-write-wins is exact.  Init to -1 ("not found").
    acc = jnp.full(labels.shape, -1, dtype=jnp.int32)
    if num_classes <= _UNROLL_CLASS_LIMIT:
        for c in range(num_classes):
            acc = jnp.where(labels == classes_ref[c], jnp.int32(c), acc)
    else:
        def body(c, acc):
            return jnp.where(labels == classes_ref[c], c, acc)

        acc = lax.fori_loop(0, num_classes, body, acc, unroll=8)

    out_ref[...] = acc


def _remap_small(labels_flat, classes):
    """Single-block path: no padding, no output slice, grid=()."""
    n = labels_flat.shape[0]
    labels_2d = labels_flat.astype(jnp.int32).reshape(1, n)  # layout-only reshape (no copy)

    out = pl.pallas_call(
        _remap_kernel,
        out_shape=jax.ShapeDtypeStruct((1, n), jnp.int32),
        in_specs=[
            pl.BlockSpec(memory_space=pltpu.MemorySpace.SMEM),   # class table, whole array
            pl.BlockSpec(memory_space=pltpu.MemorySpace.VMEM),   # labels, whole array
        ],
        out_specs=pl.BlockSpec(memory_space=pltpu.MemorySpace.VMEM),
    )(classes.astype(jnp.int32), labels_2d)

    return out.reshape(n)


def _remap_tiled(labels_flat, classes, *, max_rows_per_block=_MAX_ROWS_PER_BLOCK):
    """Tiled path for large label buffers: 1 MiB blocks, >=2 parallel grid steps."""
    n = labels_flat.shape[0]

    # Lay out as [rows, 128] int32, rows a multiple of 8.
    rows = max(8, pl.cdiv(pl.cdiv(n, _LANE), 8) * 8)
    # Aim for at least 2 blocks so ("parallel",) shards across v7x's two TCs,
    # capped at max_rows_per_block (1 MiB/block by default).
    block_rows = min(max_rows_per_block, max(8, pl.cdiv(pl.cdiv(rows, 2), 8) * 8))
    rows = pl.cdiv(rows, block_rows) * block_rows
    n_blocks = rows // block_rows
    padded_n = rows * _LANE

    padded = jnp.pad(
        labels_flat.astype(jnp.int32), (0, padded_n - n), constant_values=_LABEL_PAD
    ).reshape(rows, _LANE)

    out = pl.pallas_call(
        _remap_kernel,
        out_shape=jax.ShapeDtypeStruct((rows, _LANE), jnp.int32),
        grid=(n_blocks,),
        in_specs=[
            pl.BlockSpec(memory_space=pltpu.MemorySpace.SMEM),       # class table, whole array
            # TODO(synk): if profiling shows exposed DMA, add pipeline_mode=pl.Buffered(3).
            pl.BlockSpec((block_rows, _LANE), lambda i: (i, 0)),     # labels tile
        ],
        out_specs=pl.BlockSpec((block_rows, _LANE), lambda i: (i, 0)),
        compiler_params=pltpu.CompilerParams(
            dimension_semantics=("parallel",)  # shards across both TCs on v7x when n_blocks > 1
        ),
    )(classes.astype(jnp.int32), padded)

    return out.reshape(-1)[:n]


def _remap(labels_flat, classes, *, small_n_limit=_SMALL_N_LIMIT,
           max_rows_per_block=_MAX_ROWS_PER_BLOCK):
    """Remap a flat int label vector to indices into `classes` (else -1)."""
    if labels_flat.shape[0] <= small_n_limit:
        return _remap_small(labels_flat, classes)
    return _remap_tiled(labels_flat, classes, max_rows_per_block=max_rows_per_block)


def mutually_exclusive_label(
    support_global, query_global, shuffle_ordered_label, *, num_classes, shuffle_key=None
):
    """JAX/Pallas equivalent of src.transforms.functional.mutually_exclusive_label.

    num_classes: number of distinct classes in the episode (n_way); required
                 because jnp.unique needs a static size.
    """
    s_flat = support_global.reshape(-1).astype(jnp.int32)
    q_flat = query_global.reshape(-1).astype(jnp.int32)
    all_labels = jnp.concatenate([s_flat, q_flat])

    # TODO(synk): if the episode has fewer distinct labels than num_classes the
    # _CLASS_FILL slots participate in the shuffle, diverging from PyTorch.
    classes = jnp.unique(all_labels, size=num_classes, fill_value=_CLASS_FILL)

    if shuffle_ordered_label:
        # TODO(synk): PyTorch version uses torch.randperm (global RNG); here we
        # use an explicit deterministic JAX key.
        if shuffle_key is None:
            shuffle_key = jax.random.PRNGKey(0)
        perm = jax.random.permutation(shuffle_key, num_classes)
        classes = classes[perm]

    # Fused remap of the concatenated buffer (one kernel launch), then split.
    remapped = _remap(all_labels, classes)
    n_s = s_flat.shape[0]
    support_local = remapped[:n_s].reshape(support_global.shape)
    query_local = remapped[n_s:].reshape(query_global.shape)
    return support_local, query_local


class MutuallyExclusiveLabel:
    """Mirror of the nn.Module wrapper."""

    def __init__(self, shuffle_ordered_label):
        self.shuffle_ordered_label = shuffle_ordered_label

    def __call__(self, episode_global_labels, *, num_classes, shuffle_key=None):
        support, query = episode_global_labels
        return mutually_exclusive_label(
            support,
            query,
            self.shuffle_ordered_label,
            num_classes=num_classes,
            shuffle_key=shuffle_key,
        )


def _reference_remap(x, classes):
    """Pure-JAX reference for validation."""
    eq = x.reshape(-1)[:, None] == classes[None, :]
    idx = jnp.where(eq.any(axis=1), jnp.argmax(eq, axis=1), -1)
    return idx.reshape(x.shape).astype(jnp.int32)


if __name__ == "__main__":
    key = jax.random.PRNGKey(0)
    k1, k2, k_shuffle, k3, k4 = jax.random.split(key, 5)

    # ---- Test 1: 5-way episode, 5 support / 15 query per class (small-episode path) ----
    n_way = 5
    global_classes = jnp.array([3, 7, 11, 19, 42], dtype=jnp.int32)

    support_idx = jnp.repeat(jnp.arange(n_way), 5)              # (25,)
    query_idx = jax.random.randint(k1, (75,), 0, n_way)         # (75,)
    support_global = global_classes[support_idx]
    query_global = global_classes[query_idx]
    support_global = jax.random.permutation(k2, support_global)  # not trivially sorted

    module = MutuallyExclusiveLabel(shuffle_ordered_label=True)
    support_local, query_local = module(
        (support_global, query_global), num_classes=n_way, shuffle_key=k_shuffle
    )
    jax.block_until_ready((support_local, query_local))

    # Validate against pure-JAX reference with the identical (shuffled) class list.
    classes = jnp.unique(
        jnp.concatenate([support_global, query_global]), size=n_way, fill_value=_CLASS_FILL
    )
    perm = jax.random.permutation(k_shuffle, n_way)
    classes = classes[perm]
    ref_support = _reference_remap(support_global, classes)
    ref_query = _reference_remap(query_global, classes)

    assert support_local.shape == support_global.shape
    assert query_local.shape == query_global.shape
    assert support_local.dtype == jnp.int32
    assert bool(jnp.all(support_local == ref_support))
    assert bool(jnp.all(query_local == ref_query))
    assert bool(jnp.all((support_local >= 0) & (support_local < n_way)))
    assert bool(jnp.all((query_local >= 0) & (query_local < n_way)))

    # ---- Test 2: small path with labels missing from the class table (-> -1),
    #      odd n (not a multiple of 128).
    small_labels = jax.random.randint(k4, (50,), 0, 10, dtype=jnp.int32)
    small_classes = jnp.array([2, 4, 6], dtype=jnp.int32)
    got_small = _remap(small_labels, small_classes)
    jax.block_until_ready(got_small)
    assert bool(jnp.all(got_small == _reference_remap(small_labels, small_classes)))

    # ---- Test 3: force the tiled multi-block (parallel grid) path with a small
    #      block size, plus some labels not in the class table (-> -1).
    big_labels = jax.random.randint(k3, (3000,), 0, 8, dtype=jnp.int32)
    tile_classes = jnp.array([1, 3, 5, 7], dtype=jnp.int32)
    got_tiled = _remap(big_labels, tile_classes, small_n_limit=0, max_rows_per_block=8)
    jax.block_until_ready(got_tiled)
    assert bool(jnp.all(got_tiled == _reference_remap(big_labels, tile_classes)))

    # ---- Test 4: default tiled path (n > _SMALL_N_LIMIT), 2 parallel blocks.
    huge_labels = jax.random.randint(k3, (40000,), 0, 64, dtype=jnp.int32)
    huge_classes = jnp.arange(0, 64, 3, dtype=jnp.int32)        # 22 classes -> fori_loop path
    got_huge = _remap(huge_labels, huge_classes)
    jax.block_until_ready(got_huge)
    assert bool(jnp.all(got_huge == _reference_remap(huge_labels, huge_classes)))

    print("KERNEL_OK")
</pallas_src>

<mosaic_0001>
module attributes {stable_mosaic.version = 11 : i64} {
  func.func @_remap_kernel(%arg0: memref<5xi32, #tpu.memory_space<smem>>, %arg1: memref<1x100xi32, #tpu.memory_space<vmem>>, %arg2: memref<1x100xi32, #tpu.memory_space<vmem>>) attributes {dimension_semantics = [], scalar_prefetch = 0 : i64, scratch_operands = 0 : i64, tpu.core_type = #tpu.core_type<tc>} {
    %c0 = arith.constant 0 : index
    %c0_0 = arith.constant 0 : index
    %0 = vector.load %arg1[%c0, %c0_0] : memref<1x100xi32, #tpu.memory_space<vmem>>, vector<1x100xi32>
    %c-1_i32 = arith.constant -1 : i32
    %1 = vector.broadcast %c-1_i32 : i32 to vector<1x100xi32>
    %c0_1 = arith.constant 0 : index
    %2 = memref.load %arg0[%c0_1] : memref<5xi32, #tpu.memory_space<smem>>
    %3 = vector.broadcast %2 : i32 to vector<1x100xi32>
    %4 = arith.cmpi eq, %0, %3 : vector<1x100xi32>
    %c0_i32 = arith.constant 0 : i32
    %5 = vector.broadcast %c0_i32 : i32 to vector<1x100xi32>
    %6 = arith.select %4, %5, %1 : vector<1x100xi1>, vector<1x100xi32>
    %c1 = arith.constant 1 : index
    %7 = memref.load %arg0[%c1] : memref<5xi32, #tpu.memory_space<smem>>
    %8 = vector.broadcast %7 : i32 to vector<1x100xi32>
    %9 = arith.cmpi eq, %0, %8 : vector<1x100xi32>
    %c1_i32 = arith.constant 1 : i32
    %10 = vector.broadcast %c1_i32 : i32 to vector<1x100xi32>
    %11 = arith.select %9, %10, %6 : vector<1x100xi1>, vector<1x100xi32>
    %c2 = arith.constant 2 : index
    %12 = memref.load %arg0[%c2] : memref<5xi32, #tpu.memory_space<smem>>
    %13 = vector.broadcast %12 : i32 to vector<1x100xi32>
    %14 = arith.cmpi eq, %0, %13 : vector<1x100xi32>
    %c2_i32 = arith.constant 2 : i32
    %15 = vector.broadcast %c2_i32 : i32 to vector<1x100xi32>
    %16 = arith.select %14, %15, %11 : vector<1x100xi1>, vector<1x100xi32>
    %c3 = arith.constant 3 : index
    %17 = memref.load %arg0[%c3] : memref<5xi32, #tpu.memory_space<smem>>
    %18 = vector.broadcast %17 : i32 to vector<1x100xi32>
    %19 = arith.cmpi eq, %0, %18 : vector<1x100xi32>
    %c3_i32 = arith.constant 3 : i32
    %20 = vector.broadcast %c3_i32 : i32 to vector<1x100xi32>
    %21 = arith.select %19, %20, %16 : vector<1x100xi1>, vector<1x100xi32>
    %c4 = arith.constant 4 : index
    %22 = memref.load %arg0[%c4] : memref<5xi32, #tpu.memory_space<smem>>
    %23 = vector.broadcast %22 : i32 to vector<1x100xi32>
    %24 = arith.cmpi eq, %0, %23 : vector<1x100xi32>
    %c4_i32 = arith.constant 4 : i32
    %25 = vector.broadcast %c4_i32 : i32 to vector<1x100xi32>
    %26 = arith.select %24, %25, %21 : vector<1x100xi1>, vector<1x100xi32>
    %c0_2 = arith.constant 0 : index
    %c0_3 = arith.constant 0 : index
    %27 = vector.load %arg2[%c0_2, %c0_3] : memref<1x100xi32, #tpu.memory_space<vmem>>, vector<1x100xi32>
    tpu.vector_store %arg2[%c0_2, %c0_3], %26 {strides = array<i32>} : memref<1x100xi32, #tpu.memory_space<vmem>>, vector<1x100xi32>,
    return
  }
}

</mosaic_0001>

<llo_original>
// kernel: tpu_custom_call.1
$region0: #{tpu_custom_call.1}
  #allocation0 [shape = 'u32[]', space=smem, size = 0x4, offset = 0x4, fixed_abs, tag = 'smem constant byte address 0x4 - core index']
  #allocation1 [shape = 'u32[144,128]{1,0:T(1,128)}', space=vmem, size = 0x12000, scoped, tag = 'internal scratch']
  %s0 = inlined_call_operand.hbm [shape: s32[5], index: 0, kind: input, shape index: {}]
  %s1 = inlined_call_operand.vmem [shape: s32[1,100], index: 1, kind: input, shape index: {}]
  %s2 = inlined_call_operand.hbm [shape: s32[1,100], index: 2, kind: output, shape index: {}]
  %s3 = sld [smem:[#allocation0]]
  $region22: #{tpu_custom_call.1} parent=0
    _
  %s5 = ssub.s32 1, %s3
  %s6 = scalar_select 0, %s5, %s3
  $region1: #{tpu_custom_call.1} parent=0
    #allocation2 [shape = 'u8[512]{0}', space=smem, size = 0x200, scoped, tag = 'input window, operand 0, single buffered']
    #allocation3 [shape = 's32[1]{0}', space=sflag, size = 0x4, scoped, tag = 'scoped memory for tpu_custom_call.1']
    #allocation4 [shape = 's32[1]{0}', space=sflag, size = 0x4, scoped, tag = 'scoped memory for tpu_custom_call.1']
    #allocation5 [shape = 'u8[512]{0}', space=vmem, size = 0x400, scoped, tag = 'output window, operand 0, single buffered']
    %7 = vsyncpa [#allocation4], 0
    %8 = vsyncpa [#allocation3], 0
    // Predicated region
    $region2: #{tpu_custom_call.1} parent=1 // pred_check
      _
    $region3: #{tpu_custom_call.1} parent=1 // pred_check_branch
      %10 = sbr.rel (0) target = $region5
    $region4: #{tpu_custom_call.1} parent=1 // pred_region
      %s12 = ssub.s32 16, 16
      %13 = vsyncadd [#allocation4], %s12
      %16 = dma.hbm_to_smem %s0, 16, [#allocation2], [#allocation4]
    $region5: #{tpu_custom_call.1} parent=1 // pred_fallthru
      _
    // Predicated region
    $region6: #{tpu_custom_call.1} parent=1 // pred_check
      _
    $region7: #{tpu_custom_call.1} parent=1 // pred_check_branch
      %18 = sbr.rel (0) target = $region9
    $region8: #{tpu_custom_call.1} parent=1 // pred_region
      _
    $region9: #{tpu_custom_call.1} parent=1 // pred_fallthru
      _
    // Predicated region
    $region10: #{tpu_custom_call.1} parent=1 // pred_check
      _
    $region11: #{tpu_custom_call.1} parent=1 // pred_check_branch
      %20 = sbr.rel (0) target = $region13
    $region12: #{tpu_custom_call.1} parent=1 // pred_region
      %21 = dma.done [#allocation4], 16
    $region13: #{tpu_custom_call.1} parent=1 // pred_fallthru
      _
    %22 = sfence
    %v23 = vld [vmem:[%s1] sm:$0x1]
    %s24 = sld [smem:[#allocation2]]
    %v25 = vstv %s24
    %vm26 = vcmp.eq.s32.totalorder %v23, %v25
    %v27 = vsel %vm26, 0, 4294967295
    %s28 = sld [smem:[#allocation2 + $0x1]]
    %v29 = vstv %s28
    %vm30 = vcmp.eq.s32.totalorder %v23, %v29
    %v31 = vsel %vm30, 1, %v27
    %s32 = sld [smem:[#allocation2 + $0x2]]
    %v33 = vstv %s32
    %vm34 = vcmp.eq.s32.totalorder %v23, %v33
    %v35 = vsel %vm34, 2, %v31
    %s36 = sld [smem:[#allocation2 + $0x3]]
    %v37 = vstv %s36
    %vm38 = vcmp.eq.s32.totalorder %v23, %v37
    %v39 = vsel %vm38, 3, %v35
    %s40 = sld [smem:[#allocation2 + $0x4]]
    %v41 = vstv %s40
    %vm42 = vcmp.eq.s32.totalorder %v23, %v41
    %v43 = vsel %vm42, 4, %v39
    %vm44 = vcmask 811008
    %45 = vst.msk [vmem:[#allocation5] sm:$0x1] %vm44, %v43
    // Predicated region
    $region14: #{tpu_custom_call.1} parent=1 // pred_check
      _
    $region15: #{tpu_custom_call.1} parent=1 // pred_check_branch
      %47 = sbr.rel (0) target = $region17
    $region16: #{tpu_custom_call.1} parent=1 // pred_region
      %s49 = ssub.s32 16, 16
      %50 = vsyncadd [#allocation3], %s49
      %s52 = sshll.u32 [#allocation5], 4
      %s53 = int_to_ptr.vmem [resolvable:$true] %s52
      %55 = dma.vmem_to_hbm [thread:$0]  %s53, 16, %s2, [#allocation3]
    $region17: #{tpu_custom_call.1} parent=1 // pred_fallthru
      _
    // Predicated region
    $region18: #{tpu_custom_call.1} parent=1 // pred_check
      _
    $region19: #{tpu_custom_call.1} parent=1 // pred_check_branch
      %57 = sbr.rel (0) target = $region21
    $region20: #{tpu_custom_call.1} parent=1 // pred_region
      %58 = dma.done [#allocation3], 16
    $region21: #{tpu_custom_call.1} parent=1 // pred_fallthru
      _
    %59 = vsyncpa [#allocation3], 1
    %60 = vsyncpa [#allocation4], 1

</llo_original>
